<compile_context>
chip_gen: v7x
topology: tpu7x:2x2x1
jax: 0.10.0
libtpu: 0.0.40
codegen_flags: <defaults>
</compile_context>

<pallas_src>
import functools

import jax
import jax.numpy as jnp
from jax.experimental import pallas as pl
from jax.experimental.pallas import tpu as pltpu


def _divide_by_scale_kernel(x_ref, scale_ref, o_ref, *, eps):
    # scale_ref: (1, tile_g) float32.  Hoist the reciprocal: one divide per
    # column strip instead of one per element, so no compute slot (VALU/EUP)
    # can become the limiter on this HBM-bound kernel.
    inv = 1.0 / (scale_ref[...] + eps)                        # f32, (1, tile_g)
    o_ref[...] = (x_ref[...].astype(jnp.float32) * inv).astype(o_ref.dtype)


def _generation_budgets():
    """Return (max_tile_elems, vmem_limit_bytes) for the current TPU generation."""
    try:
        vmem_bytes = pltpu.get_tpu_info().vmem_capacity_bytes
    except Exception:  # non-TPU / older runtime: be conservative (v7x-sized)
        vmem_bytes = 64 * 1024 * 1024
    if vmem_bytes >= 96 * 1024 * 1024:
        # v5e / v6e: 128 MiB VMEM -> ~8 MiB f32 tiles, plenty of headroom.
        return 2 * 1024 * 1024, 64 * 1024 * 1024
    # v7x: 64 MiB VMEM per TensorCore and both cores live under megacore.
    return 1024 * 1024, 36 * 1024 * 1024


def _round_up(v, m):
    return -(-v // m) * m


def divide_by_scale(x_ng: jax.Array, scale_g: jax.Array, eps: float = 1e-6,
                    *, force_pallas: bool = False) -> jax.Array:
    n, g = x_ng.shape
    assert scale_g.shape == (g,)
    dtype = x_ng.dtype
    itemsize = jnp.dtype(dtype).itemsize

    # Keep scale (+eps, reciprocal) in float32 regardless of x dtype so
    # eps=1e-6 is not lost in bf16 arithmetic (matches torch holding the
    # buffer in f32).
    scale_f32 = scale_g.astype(jnp.float32)

    # Small-input fast path: a standalone pallas_call cannot beat XLA fusion
    # when launch/pipeline overhead dwarfs the (HBM-bound) work.
    if not force_pallas and n * g * itemsize < (1 << 20):
        return (x_ng.astype(jnp.float32) / (scale_f32 + eps)).astype(dtype)

    max_tile_elems, vmem_limit_bytes = _generation_budgets()

    # Layout minimums: (8,128) for 4-byte, (16,128) for 2-byte, (32,128) for 1-byte.
    align_n = max(8, 32 // itemsize)
    align_g = 128

    # Lane-dense first: take all of G if it fits the element budget (a block
    # equal to the full dim is always layout-legal), otherwise the largest
    # 128-aligned strip the budget allows.  Then size rows from what is left.
    g_cap = max(align_g, (max_tile_elems // align_n) // align_g * align_g)
    tile_g = g if _round_up(g, align_g) <= g_cap else g_cap
    n_cap = max(align_n, (max_tile_elems // max(tile_g, 1)) // align_n * align_n)
    tile_n = n if _round_up(n, align_n) <= n_cap else n_cap

    g_blocks = -(-g // tile_g)
    n_blocks = -(-n // tile_n)

    # v7x megacore: guarantee >= 2 parallel blocks so both TensorCores get
    # work (no effect on single-TC v5e/v6e).
    if n_blocks * g_blocks == 1:
        if n > align_n:
            tile_n = _round_up(-(-n // 2), align_n)
            n_blocks = -(-n // tile_n)
        elif g > align_g:
            tile_g = _round_up(-(-g // 2), align_g)
            g_blocks = -(-g // tile_g)

    # Pad only the (tiny) scale strip so every G block reads defined data;
    # x / out stay unpadded -- Pallas handles partial edge blocks, and OOB
    # output lanes are never written back.  Elementwise math cannot
    # contaminate valid lanes.
    # TODO(synk): revisit the unpadded-edge-block assumption if a reduction
    # is ever added to this kernel.
    g_span = g_blocks * tile_g
    if g_span != g:
        scale_f32 = jnp.pad(scale_f32, (0, g_span - g), constant_values=1.0)
    scale_2d = scale_f32.reshape(1, g_span)

    cost = pl.CostEstimate(
        flops=2 * n * g,
        transcendentals=0,
        bytes_accessed=2 * n * g * itemsize + g * 4,
    )

    # Grid is (G_blocks, N_blocks): the scale strip's block index depends only
    # on the outer axis, so it stays resident while the inner N axis iterates.
    out = pl.pallas_call(
        functools.partial(_divide_by_scale_kernel, eps=float(eps)),
        out_shape=jax.ShapeDtypeStruct((n, g), dtype),
        grid_spec=pltpu.PrefetchScalarGridSpec(
            num_scalar_prefetch=0,
            grid=(g_blocks, n_blocks),
            in_specs=[
                pl.BlockSpec((tile_n, tile_g), lambda j, i: (i, j)),
                pl.BlockSpec((1, tile_g), lambda j, i: (0, j)),
            ],
            out_specs=pl.BlockSpec((tile_n, tile_g), lambda j, i: (i, j)),
        ),
        compiler_params=pltpu.CompilerParams(
            dimension_semantics=("parallel", "parallel"),
            vmem_limit_bytes=vmem_limit_bytes,
        ),
        cost_estimate=cost,
    )(x_ng, scale_2d)
    return out


if __name__ == "__main__":
    key = jax.random.PRNGKey(0)
    kx, ks = jax.random.split(key)
    eps = 1e-6

    # 1) Small module-consistent shape (16 cells x 256 genes), forced through
    #    the Pallas kernel.
    n, g = 16, 256
    x = jax.random.uniform(kx, (n, g), dtype=jnp.float32) * 10.0
    s = jax.random.uniform(ks, (g,), dtype=jnp.float32) + 0.5
    out = divide_by_scale(x, s, eps, force_pallas=True)
    jax.block_until_ready(out)
    ref = x / (s + eps)
    assert out.shape == ref.shape and out.dtype == ref.dtype
    assert jnp.allclose(out, ref, rtol=1e-5, atol=1e-6), "mismatch vs reference"

    # 2) Ragged shape exercises partial edge blocks (no wrapper pad / slice).
    n2, g2 = 10, 200
    x2 = jax.random.normal(kx, (n2, g2), dtype=jnp.float32)
    s2 = jax.random.uniform(ks, (g2,), dtype=jnp.float32) + 0.5
    out2 = divide_by_scale(x2, s2, eps, force_pallas=True)
    jax.block_until_ready(out2)
    ref2 = x2 / (s2 + eps)
    assert out2.shape == ref2.shape
    assert jnp.allclose(out2, ref2, rtol=1e-5, atol=1e-6), "ragged mismatch"

    # 3) bf16 counts with float32 scale arithmetic inside the kernel.
    n3, g3 = 48, 384
    x3 = (jax.random.uniform(kx, (n3, g3), dtype=jnp.float32) * 10.0).astype(jnp.bfloat16)
    s3 = jax.random.uniform(ks, (g3,), dtype=jnp.float32) + 0.5
    out3 = divide_by_scale(x3, s3, eps, force_pallas=True)
    jax.block_until_ready(out3)
    ref3 = (x3.astype(jnp.float32) / (s3 + eps)).astype(jnp.bfloat16)
    assert out3.dtype == jnp.bfloat16
    assert jnp.allclose(out3.astype(jnp.float32), ref3.astype(jnp.float32),
                        rtol=2e-2, atol=2e-2), "bf16 mismatch"

    # 4) Larger shape that takes the Pallas path by default (no force flag).
    n4, g4 = 512, 1536
    x4 = jax.random.normal(kx, (n4, g4), dtype=jnp.float32)
    s4 = jax.random.uniform(ks, (g4,), dtype=jnp.float32) + 0.5
    out4 = divide_by_scale(x4, s4, eps)
    jax.block_until_ready(out4)
    ref4 = x4 / (s4 + eps)
    assert jnp.allclose(out4, ref4, rtol=1e-5, atol=1e-6), "large-shape mismatch"

    print("KERNEL_OK")
</pallas_src>

<mosaic_0001>
module attributes {stable_mosaic.version = 11 : i64} {
  func.func @_divide_by_scale_kernel(%arg0: i32, %arg1: i32, %arg2: memref<8x256xf32, #tpu.memory_space<vmem>>, %arg3: memref<1x256xf32, #tpu.memory_space<vmem>>, %arg4: memref<8x256xf32, #tpu.memory_space<vmem>>) attributes {dimension_semantics = [#tpu.dimension_semantics<parallel>, #tpu.dimension_semantics<parallel>], iteration_bounds = array<i64: 1, 2>, scalar_prefetch = 0 : i64, scratch_operands = 0 : i64, tpu.core_type = #tpu.core_type<tc>, window_params = [{transform_indices = @transform_0, window_bounds = array<i64: 8, 256>}, {transform_indices = @transform_1, window_bounds = array<i64: 1, 256>}, {transform_indices = @transform_2, window_bounds = array<i64: 8, 256>}]} {
    %c0 = arith.constant 0 : index
    %c0_0 = arith.constant 0 : index
    %0 = vector.load %arg3[%c0, %c0_0] : memref<1x256xf32, #tpu.memory_space<vmem>>, vector<1x256xf32>
    %cst = arith.constant 9.99999997E-7 : f32
    %1 = vector.broadcast %cst : f32 to vector<1x256xf32>
    %2 = arith.addf %0, %1 : vector<1x256xf32>
    %cst_1 = arith.constant 1.000000e+00 : f32
    %3 = vector.broadcast %cst_1 : f32 to vector<1x256xf32>
    %4 = arith.divf %3, %2 : vector<1x256xf32>
    %c0_2 = arith.constant 0 : index
    %c0_3 = arith.constant 0 : index
    %5 = vector.load %arg2[%c0_2, %c0_3] : memref<8x256xf32, #tpu.memory_space<vmem>>, vector<8x256xf32>
    %6 = vector.broadcast %4 : vector<1x256xf32> to vector<8x256xf32>
    %7 = arith.mulf %5, %6 : vector<8x256xf32>
    %c0_4 = arith.constant 0 : index
    %c0_5 = arith.constant 0 : index
    %8 = vector.load %arg4[%c0_4, %c0_5] : memref<8x256xf32, #tpu.memory_space<vmem>>, vector<8x256xf32>
    tpu.vector_store %arg4[%c0_4, %c0_5], %7 {strides = array<i32>} : memref<8x256xf32, #tpu.memory_space<vmem>>, vector<8x256xf32>,
    return
  }
  func.func @transform_0(%arg0: i32, %arg1: i32) -> (i32, i32) {
    %c0_i32 = arith.constant 0 : i32
    return %arg1, %arg0 : i32, i32
  }
  func.func @transform_1(%arg0: i32, %arg1: i32) -> (i32, i32) {
    %c0_i32 = arith.constant 0 : i32
    %c0_i32_0 = arith.constant 0 : i32
    return %c0_i32, %arg0 : i32, i32
  }
  func.func @transform_2(%arg0: i32, %arg1: i32) -> (i32, i32) {
    %c0_i32 = arith.constant 0 : i32
    return %arg1, %arg0 : i32, i32
  }
}

</mosaic_0001>

<llo_original>
// kernel: tpu_custom_call.1
$region0: #{tpu_custom_call.1}
  #allocation0 [shape = 'u32[]', space=smem, size = 0x4, offset = 0x4, fixed_abs, tag = 'smem constant byte address 0x4 - core index']
  #allocation1 [shape = 'u32[144,128]{1,0:T(1,128)}', space=vmem, size = 0x12000, scoped, tag = 'internal scratch']
  %s0 = inlined_call_operand.hbm [shape: f32[16,256], index: 0, kind: input, shape index: {}]
  %s1 = inlined_call_operand.vmem [shape: f32[1,256], index: 1, kind: input, shape index: {}]
  %s2 = inlined_call_operand.hbm [shape: f32[16,256], index: 2, kind: output, shape index: {}]
  %s3 = sld [smem:[#allocation0]]
  $region45: #{tpu_custom_call.1} parent=0
    _
  %s5 = ssub.s32 1, %s3
  %s6 = scalar_select 0, %s5, %s3
  $region1: #{tpu_custom_call.1} parent=0
    #allocation2 [shape = 'u8[16384]{0}', space=vmem, size = 0x4000, scoped, tag = 'input window, operand 0']
    #allocation3 [shape = 's32[2]{0}', space=sflag, size = 0x8, scoped, tag = 'scoped memory for tpu_custom_call.1']
    #allocation4 [shape = 's32[2]{0}', space=sflag, size = 0x8, scoped, tag = 'scoped memory for tpu_custom_call.1']
    #allocation5 [shape = 'u8[16384]{0}', space=vmem, size = 0x4000, scoped, tag = 'output window, operand 0']
    %7 = vsyncpa [#allocation3], 0
    %s8 = scalar_lea.sflag [#allocation3], 1
    %9 = vsyncpa %s8, 0
    %10 = vsyncpa [#allocation4], 0
    %s11 = scalar_lea.sflag [#allocation4], 1
    %12 = vsyncpa %s11, 0
    loop: start=0, step=1, limit=4
    $region2: #{tpu_custom_call.1} parent=1 // loop_pre_header
      _
    $region3: #{tpu_custom_call.1} parent=1 // loop_header
      %s14 = sphi 0, %s18
      %p15 = scmp.ge.s32.totalorder %s14, 4
      %s21 = sphi 0, %s33
      %s22 = sphi 0, %s29
      %s23 = sphi 0, %s21
      %s24 = sphi 0, %s22
      %s25 = sphi 0, %s23
      %s26 = sphi 0, %s24
      %s38 = sphi 0, %s40
      %s41 = sphi 0, %s38
      %s42 = sphi 0, %s41
      %s58 = sphi 0, %s42
      %s64 = sphi 0, %s66
      %s67 = sphi 0, %s64
      %s68 = sphi 0, %s67
      %s84 = sphi 0, %s68
      %s92 = sphi 0, %s94
      %s95 = sphi 0, %s92
      %s96 = sphi 0, %s95
      %s112 = sphi 0, %s96
    $region4: #{tpu_custom_call.1} parent=1 // loop_header_branch
      %17 = sbr.rel (%p15) target = $region8
    $region5: #{tpu_custom_call.1} parent=1 // loop_body
      %s19 = ssub.s32 %s14, 1
      %s20 = ssub.s32 %s14, 2
      %s27 = sadd.s32 1, %s22
      %p28 = scmp.ge.s32.totalorder %s27, 2
      %s29 = scalar_select %p28, 0, %s27
      %s30 = sadd.s32 1, %s21
      %s31 = scalar_select %p28, %s30, %s21
      %p32 = scmp.ge.s32.totalorder %s31, 1
      %s33 = scalar_select %p32, 0, %s31
      %s34 = ssub.s32 %s22, %s29
      %s35 = ssub.s32 %s21, %s33
      %s36 = sor.u32 %s34, %s35
      %p37 = scmp.eq.s32.totalorder %s36, 0
      %s39 = sadd.s32 %s38, 1
      %s40 = scalar_select %p37, %s38, %s39
      %p43 = pneg %p37
      %p44 = scmp.eq.s32.totalorder %s14, 1
      %p45 = por %p43, %p44
      %p46 = scmp.ne.s32.totalorder %s38, %s41
      %p47 = scmp.eq.s32.totalorder %s14, 0
      %p48 = por %p46, %p47
      %p49 = scmp.ne.s32.totalorder %s38, %s41
      %p50 = scmp.eq.s32.totalorder %s19, 1
      %p51 = por %p49, %p50
      %p52 = scmp.ne.s32.totalorder %s41, %s42
      %p53 = scmp.eq.s32.totalorder %s19, 0
      %p54 = por %p52, %p53
      %p55 = scmp.ne.s32.totalorder %s41, %s42
      %p56 = scmp.eq.s32.totalorder %s20, 1
      %p57 = por %p55, %p56
      %p59 = scmp.ne.s32.totalorder %s42, %s58
      %p60 = scmp.eq.s32.totalorder %s20, 0
      %p61 = por %p59, %p60
      %s62 = ssub.s32 %s21, %s33
      %p63 = scmp.eq.s32.totalorder %s62, 0
      %s65 = sadd.s32 %s64, 1
      %s66 = scalar_select %p63, %s64, %s65
      %p69 = pneg %p63
      %p70 = scmp.eq.s32.totalorder %s14, 1
      %p71 = por %p69, %p70
      %p72 = scmp.ne.s32.totalorder %s64, %s67
      %p73 = scmp.eq.s32.totalorder %s14, 0
      %p74 = por %p72, %p73
      %p75 = scmp.ne.s32.totalorder %s64, %s67
      %p76 = scmp.eq.s32.totalorder %s19, 1
      %p77 = por %p75, %p76
      %p78 = scmp.ne.s32.totalorder %s67, %s68
      %p79 = scmp.eq.s32.totalorder %s19, 0
      %p80 = por %p78, %p79
      %p81 = scmp.ne.s32.totalorder %s67, %s68
      %p82 = scmp.eq.s32.totalorder %s20, 1
      %p83 = por %p81, %p82
      %p85 = scmp.ne.s32.totalorder %s68, %s84
      %p86 = scmp.eq.s32.totalorder %s20, 0
      %p87 = por %p85, %p86
      %s88 = ssub.s32 %s22, %s29
      %s89 = ssub.s32 %s21, %s33
      %s90 = sor.u32 %s88, %s89
      %p91 = scmp.eq.s32.totalorder %s90, 0
      %s93 = sadd.s32 %s92, 1
      %s94 = scalar_select %p91, %s92, %s93
      %p97 = pneg %p91
      %p98 = scmp.eq.s32.totalorder %s14, 1
      %p99 = por %p97, %p98
      %p100 = scmp.ne.s32.totalorder %s92, %s95
      %p101 = scmp.eq.s32.totalorder %s14, 0
      %p102 = por %p100, %p101
      %p103 = scmp.ne.s32.totalorder %s92, %s95
      %p104 = scmp.eq.s32.totalorder %s19, 1
      %p105 = por %p103, %p104
      %p106 = scmp.ne.s32.totalorder %s95, %s96
      %p107 = scmp.eq.s32.totalorder %s19, 0
      %p108 = por %p106, %p107
      %p109 = scmp.ne.s32.totalorder %s95, %s96
      %p110 = scmp.eq.s32.totalorder %s20, 1
      %p111 = por %p109, %p110
      %p113 = scmp.ne.s32.totalorder %s96, %s112
      %p114 = scmp.eq.s32.totalorder %s20, 0
      %p115 = por %p113, %p114
      %p116 = scmp.le.s32.totalorder 1, %s14
      %p117 = scmp.lt.s32.totalorder %s14, 3
      %p118 = pnand %p116, %p117
      %p119 = pneg %p118
      // Predicated region
      $region9: #{tpu_custom_call.1} parent=5 // pred_check
        _
      $region10: #{tpu_custom_call.1} parent=5 // pred_check_branch
        %121 = sbr.rel (%p118) target = $region12
      $region11: #{tpu_custom_call.1} parent=5 // pred_region
        %s122 = ssub.s32 %s14, 1
        // Predicated region
        $region13: #{tpu_custom_call.1} parent=11 // pred_check
          %p123 = pneg %p80
        $region14: #{tpu_custom_call.1} parent=11 // pred_check_branch
          %125 = sbr.rel (%p123) target = $region16
        $region15: #{tpu_custom_call.1} parent=11 // pred_region
          %s126 = smul.u32 2, %s23
          %p127 = scmp.lt.s32.totalorder %s126, 1
          %s128 = scalar_select %p127, %s126, 1
          %s129 = scalar_lea.vmem %s1, %s128
          %s130 = smul.u32 2, %s23
        $region16: #{tpu_custom_call.1} parent=11 // pred_fallthru
          _
      $region12: #{tpu_custom_call.1} parent=5 // pred_fallthru
        _
      %p131 = scmp.lt.s32.totalorder %s14, 2
      // Predicated region
      $region17: #{tpu_custom_call.1} parent=5 // pred_check
        %p132 = pneg %p131
      $region18: #{tpu_custom_call.1} parent=5 // pred_check_branch
        %134 = sbr.rel (%p132) target = $region20
      $region19: #{tpu_custom_call.1} parent=5 // pred_region
        // Predicated region
        $region21: #{tpu_custom_call.1} parent=19 // pred_check
          %p135 = pneg %p48
        $region22: #{tpu_custom_call.1} parent=19 // pred_check_branch
          %137 = sbr.rel (%p135) target = $region24
        $region23: #{tpu_custom_call.1} parent=19 // pred_region
          %s138 = sand.u32 %s38, 1
          %s139 = scalar_lea.sflag [#allocation3], %s138
          %s140 = sand.u32 %s38, 1
          %s141 = smul.addr %s140, 16
          %s142 = scalar_lea.vmem [#allocation2], %s141
          %s143 = smul.u32 2, %s21
          %s145 = ssub.s32 256, 256
          %146 = vsyncadd %s139, %s145
          %s147 = smul.addr %s22, 2
          %s148 = sadd.s32 %s143, %s147
          %s149 = smul.addr %s148, 128
          %s150 = scalar_lea.hbm %s0, %s149
          %s152 = sshll.u32 %s142, 4
          %s153 = int_to_ptr.vmem [resolvable:$true] %s152
          %155 = dma.hbm_to_vmem [thread:$0]  %s150, 256, %s153, %s139
        $region24: #{tpu_custom_call.1} parent=19 // pred_fallthru
          _
      $region20: #{tpu_custom_call.1} parent=5 // pred_fallthru
        _
      %p156 = scmp.le.s32.totalorder 1, %s14
      %p157 = scmp.lt.s32.totalorder %s14, 3
      %p158 = pnand %p156, %p157
      %p159 = pneg %p158
      // Predicated region
      $region25: #{tpu_custom_call.1} parent=5 // pred_check
        _
      $region26: #{tpu_custom_call.1} parent=5 // pred_check_branch
        %161 = sbr.rel (%p158) target = $region28
      $region27: #{tpu_custom_call.1} parent=5 // pred_region
        %s162 = ssub.s32 %s14, 1
        %s163 = sand.u32 %s41, 1
        %s164 = scalar_lea.sflag [#allocation3], %s163
        %s165 = sand.u32 %s41, 1
        %s166 = smul.addr %s165, 16
        %s167 = scalar_lea.vmem [#allocation2], %s166
        // Predicated region
        $region29: #{tpu_custom_call.1} parent=27 // pred_check
          %p168 = pneg %p54
        $region30: #{tpu_custom_call.1} parent=27 // pred_check_branch
          %170 = sbr.rel (%p168) target = $region32
        $region31: #{tpu_custom_call.1} parent=27 // pred_region
          %171 = dma.done %s164, 256
        $region32: #{tpu_custom_call.1} parent=27 // pred_fallthru
          _
        %s172 = sand.u32 %s41, 1
        %s173 = scalar_lea.sflag [#allocation3], %s172
        %s174 = sand.u32 %s41, 1
        %s175 = smul.addr %s174, 16
        %s176 = scalar_lea.vmem [#allocation2], %s175
        %p177 = pneg %p54
        %p178 = pneg %p51
        %s179 = smul.u32 2, %s23
        %p180 = scmp.lt.s32.totalorder %s179, 1
        %s181 = scalar_select %p180, %s179, 1
        %s182 = scalar_lea.vmem %s1, %s181
        %p183 = pneg %p80
        %p184 = pneg %p77
        %p185 = pneg %p108
        %p186 = pneg %p105
        %s187 = sand.u32 %s95, 1
        %s188 = scalar_lea.sflag [#allocation4], %s187
        %s189 = sand.u32 %s95, 1
        %s190 = smul.addr %s189, 16
        %s191 = scalar_lea.vmem [#allocation5], %s190
        %s192 = smul.u32 2, %s23
        %s193 = smul.u32 2, %s23
        %p194 = scmp.lt.s32.totalorder %s193, 1
        %s195 = scalar_select %p194, %s193, 1
        %s196 = scalar_lea.vmem %s1, %s195
        %s197 = smul.u32 2, %s23
        %s198 = smul.u32 2, %s23
        %v199 = vld [vmem:[%s196] sm:$0x3]
        %v200 = vadd.f32 %v199, 1e-06
        %v201 = vrcp.pop %v200
        %v202 = vmul.f32 1.0, %v201
        %v203 = vld [vmem:[%s167] sm:$0xff]
        %v204 = vld [vmem:[%s167 + $0x8] sm:$0xff]
        %v206 = vlaneseq
        %v207 = vshrl.u32 %v206, 7
        %v208 = vsub.s32 0, %v207
        %v209 = vrot.slane %v202, %v208
        %v210 = vlaneseq
        %v211 = vshrl.u32 %v210, 7
        %v212 = vsub.s32 1, %v211
        %v213 = vrot.slane %v202, %v212
        %v216 = vmul.f32 %v203, %v209
        %v217 = vmul.f32 %v204, %v213
        %218 = vst [vmem:[%s191] sm:$0xff] %v216
        %219 = vst [vmem:[%s191 + $0x8] sm:$0xff] %v217
        %s220 = sand.u32 %s95, 1
        %s221 = scalar_lea.sflag [#allocation4], %s220
        %s222 = sand.u32 %s95, 1
        %s223 = smul.addr %s222, 16
        %s224 = scalar_lea.vmem [#allocation5], %s223
        // Predicated region
        $region33: #{tpu_custom_call.1} parent=27 // pred_check
          %p225 = pneg %p105
        $region34: #{tpu_custom_call.1} parent=27 // pred_check_branch
          %227 = sbr.rel (%p225) target = $region36
        $region35: #{tpu_custom_call.1} parent=27 // pred_region
          %s228 = smul.u32 2, %s23
          %s230 = ssub.s32 256, 256
          %231 = vsyncadd %s221, %s230
          %s232 = smul.addr %s24, 2
          %s233 = sadd.s32 %s228, %s232
          %s234 = smul.addr %s233, 128
          %s235 = scalar_lea.hbm %s2, %s234
          %s237 = sshll.u32 %s224, 4
          %s238 = int_to_ptr.vmem [resolvable:$true] %s237
          %240 = dma.vmem_to_hbm [thread:$0]  %s238, 256, %s235, %s221
        $region36: #{tpu_custom_call.1} parent=27 // pred_fallthru
          _
      $region28: #{tpu_custom_call.1} parent=5 // pred_fallthru
        _
      %p241 = scmp.le.s32.totalorder 2, %s14
      // Predicated region
      $region37: #{tpu_custom_call.1} parent=5 // pred_check
        %p242 = pneg %p241
      $region38: #{tpu_custom_call.1} parent=5 // pred_check_branch
        %244 = sbr.rel (%p242) target = $region40
      $region39: #{tpu_custom_call.1} parent=5 // pred_region
        %s245 = ssub.s32 %s14, 2
        // Predicated region
        $region41: #{tpu_custom_call.1} parent=39 // pred_check
          %p246 = pneg %p111
        $region42: #{tpu_custom_call.1} parent=39 // pred_check_branch
          %248 = sbr.rel (%p246) target = $region44
        $region43: #{tpu_custom_call.1} parent=39 // pred_region
          %s249 = sand.u32 %s96, 1
          %s250 = scalar_lea.sflag [#allocation4], %s249
          %s251 = sand.u32 %s96, 1
          %s252 = smul.addr %s251, 16
          %s253 = scalar_lea.vmem [#allocation5], %s252
          %254 = dma.done %s250, 256
        $region44: #{tpu_custom_call.1} parent=39 // pred_fallthru
          _
      $region40: #{tpu_custom_call.1} parent=5 // pred_fallthru
        _
    $region6: #{tpu_custom_call.1} parent=1 // loop_footer
      %s18 = sadd.s32 1, %s14
    $region7: #{tpu_custom_call.1} parent=1 // loop_footer_branch
      %13 = sbr.rel target = $region3
    $region8: #{tpu_custom_call.1} parent=1 // loop_exit
      _
    %255 = vsyncpa [#allocation3], 1
    %s256 = scalar_lea.sflag [#allocation3], 1
    %257 = vsyncpa %s256, 1
    %258 = vsyncpa [#allocation4], 1
    %s259 = scalar_lea.sflag [#allocation4], 1
    %260 = vsyncpa %s259, 1

</llo_original>
